<compile_context>
chip_gen: v5e
topology: v5e:2x2
jax: 0.10.0
libtpu: 0.0.40
codegen_flags: <defaults>
</compile_context>

<pallas_src>
import math
import functools

import jax
import jax.numpy as jnp
from jax import lax
from jax.experimental import pallas as pl
from jax.experimental.pallas import tpu as pltpu

_LANE = 128
_SUBLANE = 8
_MAX_TR = 1024            # caps the lane-padded (tr, 1) output/scratch VMEM footprint
# Per-input, per-block VMEM budget. 2 inputs x 2 pipeline buffers => ~8 MiB
# resident plus small output/scratch buffers: fits the 32 MiB scoped limit on
# every generation and leaves headroom on v7x's 64 MiB physical VMEM.
_BLOCK_BYTES = 2 * 1024 * 1024


def _round_up(x, m):
    return ((x + m - 1) // m) * m


def _round_down(x, m):
    return (x // m) * m


def _choose_tiles(num_rows, hw, itemsize, block_bytes):
    """Pick (tr, thw, rem).

    rem == 0 -> thw covers HW exactly (divisor or single full-HW block).
    rem != 0 -> grid is cdiv(hw, thw); the kernel masks the ragged tail block.
    Blocks always satisfy the (8,128) rule: tr is a multiple of 8 (or the full
    row count when num_rows < 8); thw is a multiple of 128 (or the full HW).
    Neither block dim ever exceeds the corresponding array dim.
    """
    # Widest HW tile that fits the per-input block budget at tr = 8 sublanes.
    e8 = max(_LANE, block_bytes // (_SUBLANE * itemsize))

    if hw <= e8:
        # Single HW step: grow the row tile so each block stays ~block_bytes
        # (fixed tr=8 on small HW would leave per-grid-step overhead dominant).
        thw = hw
        if num_rows < _SUBLANE:
            return num_rows, thw, 0            # full-dim row block (exempt from 8-rule)
        tr_budget = max(_SUBLANE,
                        _round_down(block_bytes // max(1, hw * itemsize), _SUBLANE))
        tr = min(tr_budget, _round_up(num_rows, _SUBLANE), _MAX_TR)
        if num_rows > _SUBLANE:
            # Keep >= 2 row blocks when possible so both v7x TensorCores get work.
            tr = min(tr, max(_SUBLANE, _round_up(pl.cdiv(num_rows, 2), _SUBLANE)))
        return tr, thw, 0

    # HW needs tiling: many parallel row steps (tr = 8), wide lane tiles.
    tr = num_rows if num_rows < _SUBLANE else _SUBLANE
    max_thw = _round_down(e8, _LANE)
    # Prefer an exact lane-aligned divisor of HW (no masking), but only if it
    # keeps blocks big enough that per-step overhead stays small.
    floor_t = max(_LANE, max_thw // 2)
    t = max_thw
    while t >= floor_t:
        if hw % t == 0:
            return tr, t, 0
        t -= _LANE
    # Ragged tail: full-width blocks + in-kernel masking beats a jnp.pad copy
    # (pad would add a full extra HBM read + write of BOTH inputs).
    return tr, max_thw, hw % max_thw


def _int_pow(x, n):
    """x**n for a static integer n >= 1, as an unrolled multiply chain (VPU only)."""
    result = None
    base = x
    while n:
        if n & 1:
            result = base if result is None else result * base
        n >>= 1
        if n:
            base = base * base
    return result


def _dice_row_sums_kernel(pred_ref, targ_ref, inter_ref, union_ref,
                          inter_acc, union_acc, *, p, rem):
    # pred_ref/targ_ref: (tr, thw) input tile.
    # inter_ref/union_ref: (tr, 1) output blocks (leading split dim squeezed),
    #   resident across the inner ("arbitrary") HW axis; written only at the
    #   last HW step from the f32 VMEM scratch accumulators.
    s = pl.program_id(0)            # HW split (v7x TensorCore balance); usually size 1
    k = pl.program_id(2)            # HW tile index within this split
    nks = pl.num_programs(2)

    @pl.when(k == 0)
    def _():
        inter_acc[...] = jnp.zeros_like(inter_acc)
        union_acc[...] = jnp.zeros_like(union_acc)

    # TODO(synk): on v7x with bf16 inputs, skipping the f32 casts / offloading the
    # lane reduction to the MXU (dot against a ones column) trims VALU pressure.
    pd = pred_ref[...].astype(jnp.float32)       # accumulate in f32 (bf16-safe)
    gt = targ_ref[...].astype(jnp.float32)

    if rem:
        # Ragged HW tail: the globally-last block reads past HW -> zero those
        # lanes (garbage otherwise pollutes valid rows' sums). Static `rem`
        # means this code is only compiled in when actually needed.
        kg = s * nks + k
        nk_total = pl.num_programs(0) * nks
        col = lax.broadcasted_iota(jnp.int32, pd.shape, 1)
        valid = jnp.logical_or(kg < nk_total - 1, col < rem)
        pd = jnp.where(valid, pd, 0.0)
        gt = jnp.where(valid, gt, 0.0)

    p_f = float(p)
    if p_f.is_integer() and p_f >= 1:
        n = int(p_f)
        pw = _int_pow(pd, n) + _int_pow(gt, n)   # stays on the VPU
    else:
        pw = pd ** p + gt ** p                   # TODO(synk): fractional p -> EUP pow

    # Per-step lane reduce (XLU) into the VMEM scratch; XLU has slack on every
    # generation and the masked (tr, 1) store happens only once per row tile.
    inter_acc[...] += jnp.sum(pd * gt, axis=-1, keepdims=True)
    union_acc[...] += jnp.sum(pw, axis=-1, keepdims=True)

    @pl.when(k == nks - 1)
    def _():
        inter_ref[...] = inter_acc[...]
        union_ref[...] = union_acc[...]


def _per_row_dice_sums(predict, target, *, p, block_bytes=_BLOCK_BYTES):
    """Returns (inter, union), each (N, C) float32:
       inter[n, c] = sum(pd_nc * gt_nc)
       union[n, c] = sum(pd_nc ** p + gt_nc ** p)
    """
    N, C = predict.shape[0], predict.shape[1]
    HW = int(math.prod(predict.shape[2:])) if predict.ndim > 2 else 1
    R = N * C

    pred_2d = predict.reshape(R, HW)   # contiguous NCHW -> free reshape (no copy)
    targ_2d = target.reshape(R, HW)

    itemsize = max(jnp.dtype(predict.dtype).itemsize,
                   jnp.dtype(target.dtype).itemsize)
    tr, thw, rem = _choose_tiles(R, HW, itemsize, block_bytes)
    if rem:
        # tail masking relies on 0**p == 0
        assert float(p) > 0, "Pallas DiceLoss requires p > 0 for ragged HW tiling"

    row_blocks = pl.cdiv(R, tr)
    nk = pl.cdiv(HW, thw)
    # v7x: with a single row block the 'parallel' row axis can't feed the 2nd
    # TensorCore -> split the HW sweep over a leading parallel axis instead.
    if row_blocks == 1 and nk >= 2 and nk % 2 == 0:
        split, nks = 2, nk // 2
    else:
        split, nks = 1, nk

    grid = (split, row_blocks, nks)
    kernel = functools.partial(_dice_row_sums_kernel, p=p, rem=rem)

    is_frac = not float(p).is_integer()
    cost = pl.CostEstimate(
        flops=5 * R * HW,
        transcendentals=2 * R * HW if is_frac else 0,
        bytes_accessed=R * HW * (jnp.dtype(predict.dtype).itemsize
                                 + jnp.dtype(target.dtype).itemsize)
                       + 2 * split * R * 4,
    )

    # NOTE: pipeline_mode=pl.Buffered(3) on the inputs is a possible few-% win
    # on v7x only (exposed-DMA jitter); left at the default depth of 2 here.
    inter, union = pl.pallas_call(
        kernel,
        out_shape=(jax.ShapeDtypeStruct((split, R, 1), jnp.float32),
                   jax.ShapeDtypeStruct((split, R, 1), jnp.float32)),
        grid_spec=pltpu.PrefetchScalarGridSpec(
            num_scalar_prefetch=0,
            grid=grid,
            in_specs=[pl.BlockSpec((tr, thw), lambda s, i, k: (i, s * nks + k)),
                      pl.BlockSpec((tr, thw), lambda s, i, k: (i, s * nks + k))],
            out_specs=(pl.BlockSpec((None, tr, 1), lambda s, i, k: (s, i, 0)),
                       pl.BlockSpec((None, tr, 1), lambda s, i, k: (s, i, 0))),
            scratch_shapes=[pltpu.VMEM((tr, 1), jnp.float32),
                            pltpu.VMEM((tr, 1), jnp.float32)],
        ),
        compiler_params=pltpu.CompilerParams(
            dimension_semantics=("parallel", "parallel", "arbitrary"),
            vmem_limit_bytes=32 * 1024 * 1024),
        cost_estimate=cost,
    )(pred_2d, targ_2d)

    inter = jnp.sum(inter, axis=0).reshape(N, C)
    union = jnp.sum(union, axis=0).reshape(N, C)
    return inter, union


class DiceLoss:
    """JAX/Pallas port of the PyTorch DiceLoss (with BinaryDiceLoss inside)."""

    def __init__(self, weight=None, ignore_index=(), smooth=1, p=2):
        if weight is not None:
            weight = jnp.asarray(weight, jnp.float32)
            self.weight = weight / jnp.sum(weight)
        else:
            self.weight = None
        self.ignore_index = list(ignore_index)
        self.smooth = smooth
        self.p = p

    def __call__(self, predict, target, flag=None):
        assert predict.shape == target.shape, "predict & target shape do not match"
        N, C = predict.shape[0], predict.shape[1]

        # Hot path (elementwise + lane reduction) runs in the Pallas kernel.
        inter_nc, union_nc = _per_row_dice_sums(predict, target, p=self.p)  # (N, C)

        if flag is None:
            mask = jnp.ones((N, 1), jnp.float32)
        else:
            mask = (jnp.asarray(flag)[:, 0:1] > 0).astype(jnp.float32)

        # Flag mask + 2x scale applied on the tiny (N, C) partials, not per element.
        inter_c = 2.0 * jnp.sum(inter_nc * mask, axis=0)      # (C,)
        union_c = jnp.sum(union_nc * mask, axis=0)            # (C,)
        dice_loss_c = 1.0 - (self.smooth + inter_c) / (self.smooth + union_c)

        keep = jnp.asarray(
            [0.0 if c in self.ignore_index else 1.0 for c in range(C)], jnp.float32)
        if self.weight is not None:
            assert self.weight.shape[0] == C, (
                "Expect weight shape [{}], get[{}]".format(C, self.weight.shape[0]))
            return jnp.sum(dice_loss_c * keep * self.weight)
        num_kept = sum(1 for c in range(C) if c not in self.ignore_index)
        if num_kept > 0:
            return jnp.sum(dice_loss_c * keep) / float(num_kept)
        return jnp.float32(0.0)


def _reference_dice_loss(predict, target, flag=None, smooth=1, p=2):
    """Pure-jnp reference mirroring the PyTorch code (for sanity checking)."""
    N, C = predict.shape[0], predict.shape[1]
    if flag is None:
        mask = jnp.ones((N,), jnp.float32)
    else:
        mask = (jnp.asarray(flag)[:, 0] > 0).astype(jnp.float32)
    total = 0.0
    for c in range(C):
        pd = predict[:, c].reshape(N, -1).astype(jnp.float32)
        gt = target[:, c].reshape(N, -1).astype(jnp.float32)
        inter = smooth + 2.0 * jnp.sum(jnp.sum(pd * gt, axis=1) * mask)
        union = smooth + jnp.sum(jnp.sum(pd ** p + gt ** p, axis=1) * mask)
        total = total + (1.0 - inter / union)
    return total / C


if __name__ == "__main__":
    key = jax.random.PRNGKey(0)
    k1, k2, k3, k4 = jax.random.split(key, 4)

    N, C, H, W = 2, 4, 16, 16
    predict = jax.nn.sigmoid(jax.random.normal(k1, (N, C, H, W), jnp.float32))
    target = (jax.random.uniform(k2, (N, C, H, W)) > 0.5).astype(jnp.float32)
    flag = jnp.array([[1.0], [0.0]], jnp.float32)

    loss_fn = DiceLoss()

    # flag=None path
    loss_none = jax.block_until_ready(loss_fn(predict, target, None))
    ref_none = _reference_dice_loss(predict, target, None)
    assert jnp.allclose(loss_none, ref_none, atol=1e-5, rtol=1e-5)

    # per-sample flag path
    loss_flag = jax.block_until_ready(loss_fn(predict, target, flag))
    ref_flag = _reference_dice_loss(predict, target, flag)
    assert jnp.allclose(loss_flag, ref_flag, atol=1e-5, rtol=1e-5)

    # integer p=3 (unrolled multiply-chain path)
    loss_p3 = jax.block_until_ready(DiceLoss(p=3)(predict, target, flag))
    ref_p3 = _reference_dice_loss(predict, target, flag, p=3)
    assert jnp.allclose(loss_p3, ref_p3, atol=1e-5, rtol=1e-5)

    pd2 = predict.reshape(N * C, -1).astype(jnp.float32)
    gt2 = target.reshape(N * C, -1).astype(jnp.float32)

    # multi-step HW accumulation + 2-way TensorCore split (row_blocks == 1):
    # tiny block budget -> thw=128, nk=2 -> grid (2, 1, 1).
    inter, union = _per_row_dice_sums(predict, target, p=2, block_bytes=4096)
    inter, union = jax.block_until_ready((inter, union))
    assert jnp.allclose(inter.reshape(-1), jnp.sum(pd2 * gt2, axis=-1),
                        atol=1e-4, rtol=1e-5)
    assert jnp.allclose(union.reshape(-1), jnp.sum(pd2 * pd2 + gt2 * gt2, axis=-1),
                        atol=1e-4, rtol=1e-5)

    # ragged HW tail: HW=200, thw=128 -> in-kernel tail masking (no jnp.pad)
    p_r = jax.nn.sigmoid(jax.random.normal(k3, (2, 3, 10, 20), jnp.float32))
    t_r = (jax.random.uniform(k4, (2, 3, 10, 20)) > 0.5).astype(jnp.float32)
    inter_r, union_r = _per_row_dice_sums(p_r, t_r, p=2, block_bytes=4096)
    inter_r, union_r = jax.block_until_ready((inter_r, union_r))
    pdr = p_r.reshape(6, -1)
    gtr = t_r.reshape(6, -1)
    assert jnp.allclose(inter_r.reshape(-1), jnp.sum(pdr * gtr, axis=-1),
                        atol=1e-4, rtol=1e-5)
    assert jnp.allclose(union_r.reshape(-1), jnp.sum(pdr * pdr + gtr * gtr, axis=-1),
                        atol=1e-4, rtol=1e-5)

    # ragged row tail: R=12 with tr=8 -> OOB garbage rows land in discarded
    # out-of-bounds output rows (no row padding copy needed).
    p_q = jax.nn.sigmoid(jax.random.normal(k3, (3, 4, 8, 8), jnp.float32))
    t_q = (jax.random.uniform(k4, (3, 4, 8, 8)) > 0.5).astype(jnp.float32)
    inter_q, union_q = _per_row_dice_sums(p_q, t_q, p=2)
    inter_q, union_q = jax.block_until_ready((inter_q, union_q))
    pdq = p_q.reshape(12, -1)
    gtq = t_q.reshape(12, -1)
    assert jnp.allclose(inter_q.reshape(-1), jnp.sum(pdq * gtq, axis=-1),
                        atol=1e-4, rtol=1e-5)
    assert jnp.allclose(union_q.reshape(-1), jnp.sum(pdq * pdq + gtq * gtq, axis=-1),
                        atol=1e-4, rtol=1e-5)

    print("KERNEL_OK")
</pallas_src>

<mosaic_0001>
module attributes {stable_mosaic.version = 11 : i64} {
  func.func @_dice_row_sums_kernel(%arg0: i32, %arg1: i32, %arg2: i32, %arg3: memref<8x256xf32, #tpu.memory_space<vmem>>, %arg4: memref<8x256xf32, #tpu.memory_space<vmem>>, %arg5: memref<1x8x1xf32, #tpu.memory_space<vmem>>, %arg6: memref<1x8x1xf32, #tpu.memory_space<vmem>>, %arg7: memref<8x1xf32, #tpu.memory_space<vmem>>, %arg8: memref<8x1xf32, #tpu.memory_space<vmem>>) attributes {dimension_semantics = [#tpu.dimension_semantics<parallel>, #tpu.dimension_semantics<parallel>, #tpu.dimension_semantics<arbitrary>], iteration_bounds = array<i64: 1, 1, 1>, scalar_prefetch = 0 : i64, scratch_operands = 2 : i64, tpu.core_type = #tpu.core_type<tc>, window_params = [{transform_indices = @transform_0, window_bounds = array<i64: 8, 256>}, {transform_indices = @transform_1, window_bounds = array<i64: 8, 256>}, {transform_indices = @transform_2, window_bounds = array<i64: 1, 8, 1>}, {transform_indices = @transform_3, window_bounds = array<i64: 1, 8, 1>}]} {
    %c0_i32 = arith.constant 0 : i32
    %0 = arith.cmpi eq, %arg2, %c0_i32 : i32
    %1 = arith.extui %0 : i1 to i32
    %c0_i32_0 = arith.constant 0 : i32
    %2 = arith.cmpi ne, %1, %c0_i32_0 : i32
    scf.if %2 {
      %cst_15 = arith.constant 0.000000e+00 : f32
      %22 = vector.broadcast %cst_15 : f32 to vector<8x1xf32>
      %c0_16 = arith.constant 0 : index
      %c0_17 = arith.constant 0 : index
      %23 = vector.load %arg7[%c0_16, %c0_17] : memref<8x1xf32, #tpu.memory_space<vmem>>, vector<8x1xf32>
      tpu.vector_store %arg7[%c0_16, %c0_17], %22 {strides = array<i32>} : memref<8x1xf32, #tpu.memory_space<vmem>>, vector<8x1xf32>,
      %cst_18 = arith.constant 0.000000e+00 : f32
      %24 = vector.broadcast %cst_18 : f32 to vector<8x1xf32>
      %c0_19 = arith.constant 0 : index
      %c0_20 = arith.constant 0 : index
      %25 = vector.load %arg8[%c0_19, %c0_20] : memref<8x1xf32, #tpu.memory_space<vmem>>, vector<8x1xf32>
      tpu.vector_store %arg8[%c0_19, %c0_20], %24 {strides = array<i32>} : memref<8x1xf32, #tpu.memory_space<vmem>>, vector<8x1xf32>,
    } else {
    }
    %c0 = arith.constant 0 : index
    %c0_1 = arith.constant 0 : index
    %3 = vector.load %arg3[%c0, %c0_1] : memref<8x256xf32, #tpu.memory_space<vmem>>, vector<8x256xf32>
    %c0_2 = arith.constant 0 : index
    %c0_3 = arith.constant 0 : index
    %4 = vector.load %arg4[%c0_2, %c0_3] : memref<8x256xf32, #tpu.memory_space<vmem>>, vector<8x256xf32>
    %5 = arith.mulf %3, %3 : vector<8x256xf32>
    %6 = arith.mulf %4, %4 : vector<8x256xf32>
    %7 = arith.addf %5, %6 : vector<8x256xf32>
    %c0_4 = arith.constant 0 : index
    %c0_5 = arith.constant 0 : index
    %8 = vector.load %arg7[%c0_4, %c0_5] : memref<8x1xf32, #tpu.memory_space<vmem>>, vector<8x1xf32>
    %9 = arith.mulf %3, %4 : vector<8x256xf32>
    %cst = arith.constant dense<0.000000e+00> : vector<8xf32>
    %10 = vector.multi_reduction <add>, %9, %cst [1] : vector<8x256xf32> to vector<8xf32>
    %11 = vector.shape_cast %10 : vector<8xf32> to vector<8x1xf32>
    %12 = arith.addf %8, %11 : vector<8x1xf32>
    %c0_6 = arith.constant 0 : index
    %c0_7 = arith.constant 0 : index
    %13 = vector.load %arg7[%c0_6, %c0_7] : memref<8x1xf32, #tpu.memory_space<vmem>>, vector<8x1xf32>
    tpu.vector_store %arg7[%c0_6, %c0_7], %12 {strides = array<i32>} : memref<8x1xf32, #tpu.memory_space<vmem>>, vector<8x1xf32>,
    %c0_8 = arith.constant 0 : index
    %c0_9 = arith.constant 0 : index
    %14 = vector.load %arg8[%c0_8, %c0_9] : memref<8x1xf32, #tpu.memory_space<vmem>>, vector<8x1xf32>
    %cst_10 = arith.constant dense<0.000000e+00> : vector<8xf32>
    %15 = vector.multi_reduction <add>, %7, %cst_10 [1] : vector<8x256xf32> to vector<8xf32>
    %16 = vector.shape_cast %15 : vector<8xf32> to vector<8x1xf32>
    %17 = arith.addf %14, %16 : vector<8x1xf32>
    %c0_11 = arith.constant 0 : index
    %c0_12 = arith.constant 0 : index
    %18 = vector.load %arg8[%c0_11, %c0_12] : memref<8x1xf32, #tpu.memory_space<vmem>>, vector<8x1xf32>
    tpu.vector_store %arg8[%c0_11, %c0_12], %17 {strides = array<i32>} : memref<8x1xf32, #tpu.memory_space<vmem>>, vector<8x1xf32>,
    %c0_i32_13 = arith.constant 0 : i32
    %19 = arith.cmpi eq, %arg2, %c0_i32_13 : i32
    %20 = arith.extui %19 : i1 to i32
    %c0_i32_14 = arith.constant 0 : i32
    %21 = arith.cmpi ne, %20, %c0_i32_14 : i32
    scf.if %21 {
      %c0_15 = arith.constant 0 : index
      %c0_16 = arith.constant 0 : index
      %22 = vector.load %arg7[%c0_15, %c0_16] : memref<8x1xf32, #tpu.memory_space<vmem>>, vector<8x1xf32>
      %c0_17 = arith.constant 0 : index
      %c0_18 = arith.constant 0 : index
      %c0_19 = arith.constant 0 : index
      %23 = vector.load %arg5[%c0_17, %c0_18, %c0_19] : memref<1x8x1xf32, #tpu.memory_space<vmem>>, vector<1x8x1xf32>
      %24 = vector.shape_cast %23 : vector<1x8x1xf32> to vector<8x1xf32>
      %25 = vector.shape_cast %22 : vector<8x1xf32> to vector<1x8x1xf32>
      tpu.vector_store %arg5[%c0_17, %c0_18, %c0_19], %25 {strides = array<i32>} : memref<1x8x1xf32, #tpu.memory_space<vmem>>, vector<1x8x1xf32>,
      %c0_20 = arith.constant 0 : index
      %c0_21 = arith.constant 0 : index
      %26 = vector.load %arg8[%c0_20, %c0_21] : memref<8x1xf32, #tpu.memory_space<vmem>>, vector<8x1xf32>
      %c0_22 = arith.constant 0 : index
      %c0_23 = arith.constant 0 : index
      %c0_24 = arith.constant 0 : index
      %27 = vector.load %arg6[%c0_22, %c0_23, %c0_24] : memref<1x8x1xf32, #tpu.memory_space<vmem>>, vector<1x8x1xf32>
      %28 = vector.shape_cast %27 : vector<1x8x1xf32> to vector<8x1xf32>
      %29 = vector.shape_cast %26 : vector<8x1xf32> to vector<1x8x1xf32>
      tpu.vector_store %arg6[%c0_22, %c0_23, %c0_24], %29 {strides = array<i32>} : memref<1x8x1xf32, #tpu.memory_space<vmem>>, vector<1x8x1xf32>,
    } else {
    }
    return
  }
  func.func @transform_0(%arg0: i32, %arg1: i32, %arg2: i32) -> (i32, i32) {
    %c1_i32 = arith.constant 1 : i32
    %0 = arith.muli %arg0, %c1_i32 : i32
    %1 = arith.addi %0, %arg2 : i32
    %c0_i32 = arith.constant 0 : i32
    return %arg1, %1 : i32, i32
  }
  func.func @transform_1(%arg0: i32, %arg1: i32, %arg2: i32) -> (i32, i32) {
    %c1_i32 = arith.constant 1 : i32
    %0 = arith.muli %arg0, %c1_i32 : i32
    %1 = arith.addi %0, %arg2 : i32
    %c0_i32 = arith.constant 0 : i32
    return %arg1, %1 : i32, i32
  }
  func.func @transform_2(%arg0: i32, %arg1: i32, %arg2: i32) -> (i32, i32, i32) {
    %c0_i32 = arith.constant 0 : i32
    %c0_i32_0 = arith.constant 0 : i32
    return %arg0, %arg1, %c0_i32 : i32, i32, i32
  }
  func.func @transform_3(%arg0: i32, %arg1: i32, %arg2: i32) -> (i32, i32, i32) {
    %c0_i32 = arith.constant 0 : i32
    %c0_i32_0 = arith.constant 0 : i32
    return %arg0, %arg1, %c0_i32 : i32, i32, i32
  }
}

</mosaic_0001>

<llo_original>
// kernel: tpu_custom_call.1
$region0: #{tpu_custom_call.1}
  #allocation0 [shape = 'u32[]', space=smem, size = 0x4, offset = 0x4, fixed_abs, tag = 'smem constant byte address 0x4 - core index']
  #allocation1 [shape = 'u32[72,128]{1,0:T(1,128)}', space=vmem, size = 0x9000, scoped, tag = 'internal scratch']
  #allocation2 [shape = 'f32[8,1]{1,0:T(8,128)}', space=vmem, size = 0x1000, scoped, tag = 'scratch operand']
  #allocation3 [shape = 'f32[8,1]{1,0:T(8,128)}', space=vmem, size = 0x1000, scoped, tag = 'scratch operand']
  %s0 = inlined_call_operand.hbm [shape: f32[8,256], index: 0, kind: input, shape index: {}]
  %s1 = inlined_call_operand.hbm [shape: f32[8,256], index: 1, kind: input, shape index: {}]
  %s2 = inlined_call_operand.vmem [shape: f32[1,8,1], index: 2, kind: output, shape index: {0}]
  %s3 = inlined_call_operand.vmem [shape: f32[1,8,1], index: 3, kind: output, shape index: {1}]
  %4 = xla_tuple %s2, %s3
  %s5 = sld [smem:[#allocation0]]
  $region42: #{tpu_custom_call.1} parent=0
    _
  %s7 = ssub.s32 1, %s5
  %s8 = scalar_select 0, %s7, %s5
  $region1: #{tpu_custom_call.1} parent=0
    #allocation4 [shape = 'u8[8192]{0}', space=vmem, size = 0x2000, scoped, tag = 'input window, operand 0, single buffered']
    #allocation5 [shape = 's32[1]{0}', space=sflag, size = 0x4, scoped, tag = 'scoped memory for tpu_custom_call.1']
    #allocation6 [shape = 'u8[8192]{0}', space=vmem, size = 0x2000, scoped, tag = 'input window, operand 1, single buffered']
    #allocation7 [shape = 's32[1]{0}', space=sflag, size = 0x4, scoped, tag = 'scoped memory for tpu_custom_call.1']
    %9 = vsyncpa [#allocation5], 0
    %10 = vsyncpa [#allocation7], 0
    // Predicated region
    $region2: #{tpu_custom_call.1} parent=1 // pred_check
      _
    $region3: #{tpu_custom_call.1} parent=1 // pred_check_branch
      %12 = sbr.rel (0) target = $region5
    $region4: #{tpu_custom_call.1} parent=1 // pred_region
      %s13 = sadd.s32 0, 0
      %s14 = smul.u32 2, %s13
      %16 = vsyncadd [#allocation5], 0
      %s17 = smul.addr %s14, 8
      %s18 = scalar_lea.hbm %s0, %s17
      %s20 = sshll.u32 %s18, 4
      %s21 = int_to_ptr.hbm [resolvable:$true] %s20
      %s22 = sshll.u32 [#allocation4], 4
      %s23 = int_to_ptr.vmem [resolvable:$true] %s22
      %25 = dma.hbm_to_vmem [thread:$0]  %s21, 256, %s23, [#allocation5]
    $region5: #{tpu_custom_call.1} parent=1 // pred_fallthru
      _
    // Predicated region
    $region6: #{tpu_custom_call.1} parent=1 // pred_check
      _
    $region7: #{tpu_custom_call.1} parent=1 // pred_check_branch
      %27 = sbr.rel (0) target = $region9
    $region8: #{tpu_custom_call.1} parent=1 // pred_region
      %s28 = sadd.s32 0, 0
      %s29 = smul.u32 2, %s28
      %31 = vsyncadd [#allocation7], 0
      %s32 = smul.addr %s29, 8
      %s33 = scalar_lea.hbm %s1, %s32
      %s35 = sshll.u32 %s33, 4
      %s36 = int_to_ptr.hbm [resolvable:$true] %s35
      %s37 = sshll.u32 [#allocation6], 4
      %s38 = int_to_ptr.vmem [resolvable:$true] %s37
      %40 = dma.hbm_to_vmem [thread:$0]  %s36, 256, %s38, [#allocation7]
    $region9: #{tpu_custom_call.1} parent=1 // pred_fallthru
      _
    // Predicated region
    $region10: #{tpu_custom_call.1} parent=1 // pred_check
      _
    $region11: #{tpu_custom_call.1} parent=1 // pred_check_branch
      %42 = sbr.rel (0) target = $region13
    $region12: #{tpu_custom_call.1} parent=1 // pred_region
      %44 = dma.done [#allocation5], 256
    $region13: #{tpu_custom_call.1} parent=1 // pred_fallthru
      _
    // Predicated region
    $region14: #{tpu_custom_call.1} parent=1 // pred_check
      _
    $region15: #{tpu_custom_call.1} parent=1 // pred_check_branch
      %46 = sbr.rel (0) target = $region17
    $region16: #{tpu_custom_call.1} parent=1 // pred_region
      %48 = dma.done [#allocation7], 256
    $region17: #{tpu_custom_call.1} parent=1 // pred_fallthru
      _
    %s49 = sadd.s32 0, 0
    %s50 = smul.u32 2, %s49
    %s51 = sadd.s32 0, 0
    %s52 = smul.u32 2, %s51
    %p53 = scmp.eq.s32.totalorder 0, 0
    // Predicated region
    $region18: #{tpu_custom_call.1} parent=1 // pred_check
      %p54 = pneg %p53
    $region19: #{tpu_custom_call.1} parent=1 // pred_check_branch
      %56 = sbr.rel (%p54) target = $region21
    $region20: #{tpu_custom_call.1} parent=1 // pred_region
      %vm57 = vcmask 7168
      %58 = vst.msk [vmem:[#allocation2] sm:$0xff] %vm57, 0.0
      %59 = vst.msk [vmem:[#allocation3] sm:$0xff] %vm57, 0.0
    $region21: #{tpu_custom_call.1} parent=1 // pred_fallthru
      _
    %v60 = vld [vmem:[#allocation4] sm:$0xff]
    %v61 = vld [vmem:[#allocation4 + $0x8] sm:$0xff]
    %v62 = vld [vmem:[#allocation6] sm:$0xff]
    %v63 = vld [vmem:[#allocation6 + $0x8] sm:$0xff]
    %v64 = vmul.f32 %v60, %v60
    %v65 = vmul.f32 %v61, %v61
    %v66 = vmul.f32 %v62, %v62
    %v67 = vmul.f32 %v63, %v63
    %v68 = vadd.f32 %v64, %v66
    %v69 = vadd.f32 %v65, %v67
    %v70 = vld [vmem:[#allocation2] sm:$0xff]
    %v71 = vmul.f32 %v60, %v62
    %v72 = vmul.f32 %v61, %v63
    %v73 = vadd.f32 %v71, %v72
    %74 = vadd.xlane.f32.xlu0 %v73
    %v75 = vpop.xlane.xlu0 %74
    %v76 = vadd.f32 %v70, %v75
    %vm77 = vcmask 7168
    %78 = vst.msk [vmem:[#allocation2] sm:$0xff] %vm77, %v76
    %v79 = vld [vmem:[#allocation3] sm:$0xff]
    %v80 = vadd.f32 %v68, %v69
    %81 = vadd.xlane.f32.xlu0 %v80
    %v82 = vpop.xlane.xlu0 %81
    %v83 = vadd.f32 %v79, %v82
    %84 = vst.msk [vmem:[#allocation3] sm:$0xff] %vm77, %v83
    // Predicated region
    $region22: #{tpu_custom_call.1} parent=1 // pred_check
      %p85 = pneg %p53
    $region23: #{tpu_custom_call.1} parent=1 // pred_check_branch
      %87 = sbr.rel (%p85) target = $region25
    $region24: #{tpu_custom_call.1} parent=1 // pred_region
      %v88 = vld [vmem:[#allocation2] sm:$0xff]
      %89 = vst.msk [vmem:[%s2] sm:$0xff] %vm77, %v88
      %v90 = vld [vmem:[#allocation3] sm:$0xff]
      %91 = vst.msk [vmem:[%s3] sm:$0xff] %vm77, %v90
    $region25: #{tpu_custom_call.1} parent=1 // pred_fallthru
      _
    // Predicated region
    $region26: #{tpu_custom_call.1} parent=1 // pred_check
      _
    $region27: #{tpu_custom_call.1} parent=1 // pred_check_branch
      %93 = sbr.rel (0) target = $region29
    $region28: #{tpu_custom_call.1} parent=1 // pred_region
      _
    $region29: #{tpu_custom_call.1} parent=1 // pred_fallthru
      _
    // Predicated region
    $region30: #{tpu_custom_call.1} parent=1 // pred_check
      _
    $region31: #{tpu_custom_call.1} parent=1 // pred_check_branch
      %95 = sbr.rel (0) target = $region33
    $region32: #{tpu_custom_call.1} parent=1 // pred_region
      _
    $region33: #{tpu_custom_call.1} parent=1 // pred_fallthru
      _
    // Predicated region
    $region34: #{tpu_custom_call.1} parent=1 // pred_check
      _
    $region35: #{tpu_custom_call.1} parent=1 // pred_check_branch
      %97 = sbr.rel (0) target = $region37
    $region36: #{tpu_custom_call.1} parent=1 // pred_region
      _
    $region37: #{tpu_custom_call.1} parent=1 // pred_fallthru
      _
    // Predicated region
    $region38: #{tpu_custom_call.1} parent=1 // pred_check
      _
    $region39: #{tpu_custom_call.1} parent=1 // pred_check_branch
      %99 = sbr.rel (0) target = $region41
    $region40: #{tpu_custom_call.1} parent=1 // pred_region
      _
    $region41: #{tpu_custom_call.1} parent=1 // pred_fallthru
      _
    %100 = vsyncpa [#allocation5], 1
    %101 = vsyncpa [#allocation7], 1

</llo_original>
